<compile_context>
chip_gen: v5e
topology: v5e:2x2
jax: 0.10.0
libtpu: 0.0.40
codegen_flags: <defaults>
</compile_context>

<pallas_src>
import jax
import jax.numpy as jnp
from jax.experimental import pallas as pl
from jax.experimental.pallas import tpu as pltpu


def _round_up(x, m):
    return ((x + m - 1) // m) * m


def _fused_kernel(x_ref, w_ref, o_ref):
    # Single MXU pass: out = x @ (scaling * W_a @ W_b); scaling pre-folded.
    o_ref[...] = jnp.dot(
        x_ref[...], w_ref[...], preferred_element_type=jnp.float32
    ).astype(o_ref.dtype)


def _factored_kernel(x_ref, wa_ref, wb_ref, o_ref):
    # Two chained MXU passes with f32 accumulation; scaling pre-folded into
    # W_b.  The intermediate is cast back to the weight dtype so the second
    # matmul stays on the native (bf16) MXU path when inputs are low
    # precision (identity cast when everything is f32).
    xa = jnp.dot(x_ref[...], wa_ref[...], preferred_element_type=jnp.float32)
    o_ref[...] = jnp.dot(
        xa.astype(wb_ref.dtype), wb_ref[...], preferred_element_type=jnp.float32
    ).astype(o_ref.dtype)


def _vmem_sizing():
    """Returns (tiling_budget_bytes, vmem_limit_bytes) sized from the chip."""
    vmem_cap = None
    try:
        vmem_cap = getattr(pltpu.get_tpu_info(), "vmem_capacity_bytes", None)
    except Exception:
        vmem_cap = None
    if vmem_cap is not None and vmem_cap >= 128 * 1024 * 1024:
        # v5e / v6e: 128 MiB physical VMEM -> bigger row tiles.
        return 56 * 1024 * 1024, 72 * 1024 * 1024
    # v7x (64 MiB per TensorCore) or unknown chip: stay conservative.
    return 28 * 1024 * 1024, 40 * 1024 * 1024


def prepare_lora_weights(w_a, w_b, *, rank, alpha, dtype, force_factored=False):
    """One-time weight preparation (hoist out of the per-forward path).

    Folds scaling = alpha / rank into the weights, zero-pads the rank axis to
    a lane-dense multiple of 128, and -- when the dims are small enough that a
    merged matrix moves no more data than the two factors -- pre-merges
    W = scaling * (W_a @ W_b) so the kernel issues a single MXU pass.
    """
    assert rank > 0
    scaling = float(alpha) / float(rank)
    in_dim = w_a.shape[0]
    out_dim = w_b.shape[-1]
    rank_p = _round_up(rank, 128)

    use_fused = (in_dim * out_dim <= rank_p * (in_dim + out_dim)) and not force_factored
    if use_fused:
        w = (w_a.astype(jnp.float32) @ w_b.astype(jnp.float32)) * scaling
        return {"mode": "fused", "w": w.astype(dtype),
                "in_dim": in_dim, "out_dim": out_dim,
                "rank": rank, "rank_p": rank_p}

    wa = jnp.pad(w_a.astype(dtype), ((0, 0), (0, rank_p - rank)))
    wb = jnp.pad((w_b.astype(jnp.float32) * scaling).astype(dtype),
                 ((0, rank_p - rank), (0, 0)))
    return {"mode": "factored", "w_a": wa, "w_b": wb,
            "in_dim": in_dim, "out_dim": out_dim,
            "rank": rank, "rank_p": rank_p}


def _choose_tile_m(m, budget, weight_bytes, per_row_bytes):
    avail = max(budget - weight_bytes, 0)
    tile = avail // max(per_row_bytes, 1)
    tile = max(8, min(1024, (int(tile) // 8) * 8))
    if m > 8:
        # Keep the 1-D row grid at >=2 (up to 8) steps when m allows: lets
        # "parallel" semantics shard rows across v7x's two TensorCores and
        # gives the pipeline multiple steps to overlap DMA with compute.
        if m >= 4096:
            min_steps = 8
        elif m >= 1024:
            min_steps = 4
        else:
            min_steps = 2
        tile = min(tile, max(8, _round_up(-(-m // min_steps), 8)))
        tile = min(tile, _round_up(m, 8))
    else:
        tile = m  # full-extent row block for tiny inputs
    return tile


def lora_apply(x, prepared, *, dropout=0.0):
    """scaling * (dropout(x) @ W_a @ W_b) with pre-prepared weights."""
    # TODO(synk): nn.Dropout train-mode stochastic masking is not implemented;
    # this is eval-mode (identity) dropout.
    del dropout

    in_dim = prepared["in_dim"]
    out_dim = prepared["out_dim"]
    rank = prepared["rank"]
    rank_p = prepared["rank_p"]
    assert x.shape[-1] == in_dim

    lead = x.shape[:-1]
    x2d = x.reshape(-1, in_dim)
    m = x2d.shape[0]
    dtype = x.dtype
    itemsize = jnp.dtype(dtype).itemsize
    fused = prepared["mode"] == "fused"

    budget, vmem_limit = _vmem_sizing()

    # VMEM accounting: weights single-buffered (whole-array VMEM residency);
    # x / out row tiles double-buffered by the pipeline; f32 staging for the
    # matmul results before the dtype cast is counted when dtype != f32.
    if fused:
        weight_bytes = in_dim * out_dim * itemsize
    else:
        weight_bytes = (in_dim * rank_p + rank_p * out_dim) * itemsize
    per_row = 2 * (in_dim + out_dim) * itemsize
    if itemsize < 4:
        per_row += out_dim * 4
    if not fused:
        per_row += rank_p * 4
        if itemsize < 4:
            per_row += rank_p * itemsize

    tile_m = _choose_tile_m(m, budget, weight_bytes, per_row)
    grid = (pl.cdiv(m, tile_m),)

    compiler_params = pltpu.CompilerParams(
        dimension_semantics=("parallel",),
        vmem_limit_bytes=vmem_limit,
    )

    # x / out: row-tiled, full-extent (possibly non-128-multiple) lane dim so
    # no padded HBM copies are needed; ragged final row block is clipped.
    x_spec = pl.BlockSpec((tile_m, in_dim), lambda i: (i, 0))
    out_spec = pl.BlockSpec((tile_m, out_dim), lambda i: (i, 0))
    # Grid-invariant weights: whole array resident in VMEM once (no
    # double-buffering).
    w_spec = pl.BlockSpec(memory_space=pltpu.MemorySpace.VMEM)

    if fused:
        cost = pl.CostEstimate(
            flops=2 * m * in_dim * out_dim,
            transcendentals=0,
            bytes_accessed=m * (in_dim + out_dim) * itemsize + weight_bytes,
        )
        out2d = pl.pallas_call(
            _fused_kernel,
            out_shape=jax.ShapeDtypeStruct((m, out_dim), dtype),
            grid_spec=pltpu.PrefetchScalarGridSpec(
                num_scalar_prefetch=0,
                grid=grid,
                in_specs=[x_spec, w_spec],
                out_specs=out_spec,
            ),
            compiler_params=compiler_params,
            cost_estimate=cost,
        )(x2d, prepared["w"])
    else:
        cost = pl.CostEstimate(
            flops=2 * m * rank * (in_dim + out_dim),
            transcendentals=0,
            bytes_accessed=m * (in_dim + out_dim) * itemsize + weight_bytes,
        )
        out2d = pl.pallas_call(
            _factored_kernel,
            out_shape=jax.ShapeDtypeStruct((m, out_dim), dtype),
            grid_spec=pltpu.PrefetchScalarGridSpec(
                num_scalar_prefetch=0,
                grid=grid,
                in_specs=[x_spec, w_spec, w_spec],
                out_specs=out_spec,
            ),
            compiler_params=compiler_params,
            cost_estimate=cost,
        )(x2d, prepared["w_a"], prepared["w_b"])

    return out2d.reshape(*lead, out_dim)


def lora_forward(x, w_a, w_b, *, rank, alpha, dropout=0.0, force_factored=False):
    """Pallas implementation of LoRALayer.forward.

    For repeated calls with fixed parameters, call prepare_lora_weights once
    and reuse lora_apply directly (weight prep is then hoisted off the
    per-step path).
    """
    if rank <= 0:
        # rank == 0 branch of the PyTorch module: return zeros_like(x)
        # (note: last dim stays in_dim, mirroring the original module).
        return jnp.zeros_like(x)
    prepared = prepare_lora_weights(
        w_a, w_b, rank=rank, alpha=alpha, dtype=x.dtype,
        force_factored=force_factored,
    )
    return lora_apply(x, prepared, dropout=dropout)


if __name__ == "__main__":
    # Module hyperparameters (small, consistent with LoRALayer.__init__).
    in_dim, out_dim = 32, 32
    rank, alpha, dropout = 4, 8, 0.0
    batch, seq = 2, 8

    key = jax.random.PRNGKey(0)
    k_x, k_wa, k_wb = jax.random.split(key, 3)

    # W_a init matches the PyTorch module: randn(in_dim, rank) / sqrt(rank).
    std_dev = 1.0 / jnp.sqrt(jnp.float32(rank))
    w_a = jax.random.normal(k_wa, (in_dim, rank), dtype=jnp.float32) * std_dev
    # The module initializes W_b to zeros; use small non-zero values here so
    # the numerical check is non-trivial (forward semantics hold regardless).
    w_b = jax.random.normal(k_wb, (rank, out_dim), dtype=jnp.float32) * 0.1

    x = jax.random.normal(k_x, (batch, seq, in_dim), dtype=jnp.float32)

    ref = (alpha / rank) * jnp.einsum(
        "bsi,ir,ro->bso", x, w_a, w_b, precision=jax.lax.Precision.HIGHEST
    )

    # Merged (small-dim) path.
    out_fused = jax.block_until_ready(
        lora_forward(x, w_a, w_b, rank=rank, alpha=alpha, dropout=dropout)
    )
    assert out_fused.shape == ref.shape
    assert jnp.allclose(out_fused, ref, atol=1e-3, rtol=1e-3), "fused mismatch"

    # Factored (large-dim) path, forced for coverage of the second kernel.
    out_fact = jax.block_until_ready(
        lora_forward(
            x, w_a, w_b, rank=rank, alpha=alpha, dropout=dropout,
            force_factored=True,
        )
    )
    assert jnp.allclose(out_fact, ref, atol=1e-3, rtol=1e-3), "factored mismatch"

    # rank == 0 branch (mirrors the PyTorch module: zeros_like(x)).
    out0 = jax.block_until_ready(
        lora_forward(x, w_a, w_b, rank=0, alpha=alpha, dropout=dropout)
    )
    assert out0.shape == x.shape and bool(jnp.all(out0 == 0))

    print("KERNEL_OK")
</pallas_src>

<mosaic_0001>
module attributes {stable_mosaic.version = 11 : i64} {
  func.func @_fused_kernel(%arg0: i32, %arg1: memref<8x32xf32, #tpu.memory_space<vmem>>, %arg2: memref<32x32xf32, #tpu.memory_space<vmem>>, %arg3: memref<8x32xf32, #tpu.memory_space<vmem>>) attributes {dimension_semantics = [#tpu.dimension_semantics<parallel>], iteration_bounds = array<i64: 2>, scalar_prefetch = 0 : i64, scratch_operands = 0 : i64, tpu.core_type = #tpu.core_type<tc>, window_params = [{transform_indices = @transform_0, window_bounds = array<i64: 8, 32>}, {pipeline_mode = #tpu.pipeline_mode<synchronous>, transform_indices = @transform_1, window_bounds = array<i64: 32, 32>}, {transform_indices = @transform_2, window_bounds = array<i64: 8, 32>}]} {
    %c0 = arith.constant 0 : index
    %c0_0 = arith.constant 0 : index
    %0 = vector.load %arg1[%c0, %c0_0] : memref<8x32xf32, #tpu.memory_space<vmem>>, vector<8x32xf32>
    %c0_1 = arith.constant 0 : index
    %c0_2 = arith.constant 0 : index
    %1 = vector.load %arg2[%c0_1, %c0_2] : memref<32x32xf32, #tpu.memory_space<vmem>>, vector<32x32xf32>
    %cst = arith.constant dense<0.000000e+00> : vector<8x32xf32>
    %2 = tpu.matmul %0, %1, %cst {dimension_numbers = #tpu.dot_dimension_numbers<[1], [0], [0], [1], [0, 0, 1, 1], [], []>} : vector<8x32xf32>, vector<32x32xf32>, vector<8x32xf32> -> vector<8x32xf32>
    %c0_3 = arith.constant 0 : index
    %c0_4 = arith.constant 0 : index
    %3 = vector.load %arg3[%c0_3, %c0_4] : memref<8x32xf32, #tpu.memory_space<vmem>>, vector<8x32xf32>
    tpu.vector_store %arg3[%c0_3, %c0_4], %2 {strides = array<i32>} : memref<8x32xf32, #tpu.memory_space<vmem>>, vector<8x32xf32>,
    return
  }
  func.func @transform_0(%arg0: i32) -> (i32, i32) {
    %c0_i32 = arith.constant 0 : i32
    %c0_i32_0 = arith.constant 0 : i32
    return %arg0, %c0_i32 : i32, i32
  }
  func.func @transform_1(%arg0: i32) -> (i32, i32) {
    %c0_i32 = arith.constant 0 : i32
    %c0_i32_0 = arith.constant 0 : i32
    %c0_i32_1 = arith.constant 0 : i32
    return %c0_i32, %c0_i32_0 : i32, i32
  }
  func.func @transform_2(%arg0: i32) -> (i32, i32) {
    %c0_i32 = arith.constant 0 : i32
    %c0_i32_0 = arith.constant 0 : i32
    return %arg0, %c0_i32 : i32, i32
  }
}

</mosaic_0001>

<llo_original>
// kernel: tpu_custom_call.1
$region0: #{tpu_custom_call.1}
  #allocation0 [shape = 'u32[]', space=smem, size = 0x4, offset = 0x4, fixed_abs, tag = 'smem constant byte address 0x4 - core index']
  #allocation1 [shape = 'u32[72,128]{1,0:T(1,128)}', space=vmem, size = 0x9000, scoped, tag = 'internal scratch']
  %s0 = inlined_call_operand.hbm [shape: f32[16,32], index: 0, kind: input, shape index: {}]
  %s1 = inlined_call_operand.hbm [shape: f32[32,32], index: 1, kind: input, shape index: {}]
  %s2 = inlined_call_operand.hbm [shape: f32[16,32], index: 2, kind: output, shape index: {}]
  %s3 = sld [smem:[#allocation0]]
  $region49: #{tpu_custom_call.1} parent=0
    _
  %s5 = ssub.s32 1, %s3
  %s6 = scalar_select 0, %s5, %s3
  $region1: #{tpu_custom_call.1} parent=0
    #allocation2 [shape = 'u8[8192]{0}', space=vmem, size = 0x2000, scoped, tag = 'input window, operand 0']
    #allocation3 [shape = 's32[2]{0}', space=sflag, size = 0x8, scoped, tag = 'scoped memory for tpu_custom_call.1']
    #allocation4 [shape = 's32[2]{0}', space=sflag, size = 0x8, scoped, tag = 'scoped memory for tpu_custom_call.1']
    #allocation5 [shape = 'u8[16384]{0}', space=vmem, size = 0x4000, scoped, tag = 'input window, operand 1, single buffered']
    #allocation6 [shape = 's32[1]{0}', space=sflag, size = 0x4, scoped, tag = 'scoped memory for tpu_custom_call.1']
    #allocation7 [shape = 'u8[8192]{0}', space=vmem, size = 0x2000, scoped, tag = 'output window, operand 0']
    %7 = vsyncpa [#allocation3], 0
    %s8 = scalar_lea.sflag [#allocation3], 1
    %9 = vsyncpa %s8, 0
    %10 = vsyncpa [#allocation6], 0
    %11 = vsyncpa [#allocation4], 0
    %s12 = scalar_lea.sflag [#allocation4], 1
    %13 = vsyncpa %s12, 0
    loop: start=0, step=1, limit=4
    $region2: #{tpu_custom_call.1} parent=1 // loop_pre_header
      _
    $region3: #{tpu_custom_call.1} parent=1 // loop_header
      %s15 = sphi 0, %s19
      %p16 = scmp.ge.s32.totalorder %s15, 4
      %s25 = sphi 0, %s27
      %s28 = sphi 0, %s25
      %s29 = sphi 0, %s28
      %s45 = sphi 0, %s29
      %s49 = sphi 0, %s49
      %s51 = sphi 0, %s49
      %s52 = sphi 0, %s51
      %s66 = sphi 0, %s52
      %s72 = sphi 0, %s74
      %s75 = sphi 0, %s72
      %s76 = sphi 0, %s75
      %s92 = sphi 0, %s76
    $region4: #{tpu_custom_call.1} parent=1 // loop_header_branch
      %18 = sbr.rel (%p16) target = $region8
    $region5: #{tpu_custom_call.1} parent=1 // loop_body
      %s20 = ssub.s32 %s15, 1
      %s21 = ssub.s32 %s15, 2
      %s22 = sadd.s32 %s15, 1
      %s23 = ssub.s32 %s15, %s22
      %p24 = scmp.eq.s32.totalorder %s23, 0
      %s26 = sadd.s32 %s25, 1
      %s27 = scalar_select %p24, %s25, %s26
      %p30 = pneg %p24
      %p31 = scmp.eq.s32.totalorder %s15, 1
      %p32 = por %p30, %p31
      %p33 = scmp.ne.s32.totalorder %s25, %s28
      %p34 = scmp.eq.s32.totalorder %s15, 0
      %p35 = por %p33, %p34
      %p36 = scmp.ne.s32.totalorder %s25, %s28
      %p37 = scmp.eq.s32.totalorder %s20, 1
      %p38 = por %p36, %p37
      %p39 = scmp.ne.s32.totalorder %s28, %s29
      %p40 = scmp.eq.s32.totalorder %s20, 0
      %p41 = por %p39, %p40
      %p42 = scmp.ne.s32.totalorder %s28, %s29
      %p43 = scmp.eq.s32.totalorder %s21, 1
      %p44 = por %p42, %p43
      %p46 = scmp.ne.s32.totalorder %s29, %s45
      %p47 = scmp.eq.s32.totalorder %s21, 0
      %p48 = por %p46, %p47
      %s50 = sadd.s32 %s49, 1
      %p53 = scmp.eq.s32.totalorder %s15, 1
      %p54 = scmp.ne.s32.totalorder %s49, %s51
      %p55 = scmp.eq.s32.totalorder %s15, 0
      %p56 = por %p54, %p55
      %p57 = scmp.ne.s32.totalorder %s49, %s51
      %p58 = scmp.eq.s32.totalorder %s20, 1
      %p59 = por %p57, %p58
      %p60 = scmp.ne.s32.totalorder %s51, %s52
      %p61 = scmp.eq.s32.totalorder %s20, 0
      %p62 = por %p60, %p61
      %p63 = scmp.ne.s32.totalorder %s51, %s52
      %p64 = scmp.eq.s32.totalorder %s21, 1
      %p65 = por %p63, %p64
      %p67 = scmp.ne.s32.totalorder %s52, %s66
      %p68 = scmp.eq.s32.totalorder %s21, 0
      %p69 = por %p67, %p68
      %s70 = ssub.s32 %s15, %s22
      %p71 = scmp.eq.s32.totalorder %s70, 0
      %s73 = sadd.s32 %s72, 1
      %s74 = scalar_select %p71, %s72, %s73
      %p77 = pneg %p71
      %p78 = scmp.eq.s32.totalorder %s15, 1
      %p79 = por %p77, %p78
      %p80 = scmp.ne.s32.totalorder %s72, %s75
      %p81 = scmp.eq.s32.totalorder %s15, 0
      %p82 = por %p80, %p81
      %p83 = scmp.ne.s32.totalorder %s72, %s75
      %p84 = scmp.eq.s32.totalorder %s20, 1
      %p85 = por %p83, %p84
      %p86 = scmp.ne.s32.totalorder %s75, %s76
      %p87 = scmp.eq.s32.totalorder %s20, 0
      %p88 = por %p86, %p87
      %p89 = scmp.ne.s32.totalorder %s75, %s76
      %p90 = scmp.eq.s32.totalorder %s21, 1
      %p91 = por %p89, %p90
      %p93 = scmp.ne.s32.totalorder %s76, %s92
      %p94 = scmp.eq.s32.totalorder %s21, 0
      %p95 = por %p93, %p94
      %p96 = scmp.le.s32.totalorder 1, %s15
      %p97 = scmp.lt.s32.totalorder %s15, 3
      %p98 = pnand %p96, %p97
      %p99 = pneg %p98
      // Predicated region
      $region9: #{tpu_custom_call.1} parent=5 // pred_check
        _
      $region10: #{tpu_custom_call.1} parent=5 // pred_check_branch
        %101 = sbr.rel (%p98) target = $region12
      $region11: #{tpu_custom_call.1} parent=5 // pred_region
        %s102 = ssub.s32 %s15, 1
        // Predicated region
        $region13: #{tpu_custom_call.1} parent=11 // pred_check
          %p103 = pneg %p62
        $region14: #{tpu_custom_call.1} parent=11 // pred_check_branch
          %105 = sbr.rel (%p103) target = $region16
        $region15: #{tpu_custom_call.1} parent=11 // pred_region
          %107 = vsyncadd [#allocation6], 0
          %s108 = sshll.u32 %s1, 4
          %s109 = int_to_ptr.hbm [resolvable:$true] %s108
          %s110 = sshll.u32 [#allocation5], 4
          %s111 = int_to_ptr.vmem [resolvable:$true] %s110
          %116 = dma.hbm_to_vmem [thread:$0]  %s109, 512, %s111, [#allocation6], 128, 128, 8
        $region16: #{tpu_custom_call.1} parent=11 // pred_fallthru
          _
      $region12: #{tpu_custom_call.1} parent=5 // pred_fallthru
        _
      %p117 = scmp.lt.s32.totalorder %s15, 2
      // Predicated region
      $region17: #{tpu_custom_call.1} parent=5 // pred_check
        %p118 = pneg %p117
      $region18: #{tpu_custom_call.1} parent=5 // pred_check_branch
        %120 = sbr.rel (%p118) target = $region20
      $region19: #{tpu_custom_call.1} parent=5 // pred_region
        // Predicated region
        $region21: #{tpu_custom_call.1} parent=19 // pred_check
          %p121 = pneg %p35
        $region22: #{tpu_custom_call.1} parent=19 // pred_check_branch
          %123 = sbr.rel (%p121) target = $region24
        $region23: #{tpu_custom_call.1} parent=19 // pred_region
          %s124 = sand.u32 %s25, 1
          %s125 = scalar_lea.sflag [#allocation3], %s124
          %s126 = sand.u32 %s25, 1
          %s127 = smul.addr %s126, 8
          %s128 = scalar_lea.vmem [#allocation2], %s127
          %130 = vsyncadd %s125, 0
          %s131 = smul.addr %s15, 8
          %s132 = scalar_lea.hbm %s0, %s131
          %s134 = sshll.u32 %s132, 4
          %s135 = int_to_ptr.hbm [resolvable:$true] %s134
          %s136 = sshll.u32 %s128, 4
          %s137 = int_to_ptr.vmem [resolvable:$true] %s136
          %139 = dma.hbm_to_vmem [thread:$0]  %s135, 128, %s137, %s125
        $region24: #{tpu_custom_call.1} parent=19 // pred_fallthru
          _
      $region20: #{tpu_custom_call.1} parent=5 // pred_fallthru
        _
      %p140 = scmp.le.s32.totalorder 1, %s15
      %p141 = scmp.lt.s32.totalorder %s15, 3
      %p142 = pnand %p140, %p141
      %p143 = pneg %p142
      // Predicated region
      $region25: #{tpu_custom_call.1} parent=5 // pred_check
        _
      $region26: #{tpu_custom_call.1} parent=5 // pred_check_branch
        %145 = sbr.rel (%p142) target = $region28
      $region27: #{tpu_custom_call.1} parent=5 // pred_region
        %s146 = ssub.s32 %s15, 1
        %s147 = sand.u32 %s28, 1
        %s148 = scalar_lea.sflag [#allocation3], %s147
        %s149 = sand.u32 %s28, 1
        %s150 = smul.addr %s149, 8
        %s151 = scalar_lea.vmem [#allocation2], %s150
        // Predicated region
        $region29: #{tpu_custom_call.1} parent=27 // pred_check
          %p152 = pneg %p41
        $region30: #{tpu_custom_call.1} parent=27 // pred_check_branch
          %154 = sbr.rel (%p152) target = $region32
        $region31: #{tpu_custom_call.1} parent=27 // pred_region
          %156 = dma.done %s148, 128
        $region32: #{tpu_custom_call.1} parent=27 // pred_fallthru
          _
        // Predicated region
        $region33: #{tpu_custom_call.1} parent=27 // pred_check
          %p157 = pneg %p62
        $region34: #{tpu_custom_call.1} parent=27 // pred_check_branch
          %159 = sbr.rel (%p157) target = $region36
        $region35: #{tpu_custom_call.1} parent=27 // pred_region
          %161 = dma.done [#allocation6], 512
        $region36: #{tpu_custom_call.1} parent=27 // pred_fallthru
          _
        %s162 = sand.u32 %s28, 1
        %s163 = scalar_lea.sflag [#allocation3], %s162
        %s164 = sand.u32 %s28, 1
        %s165 = smul.addr %s164, 8
        %s166 = scalar_lea.vmem [#allocation2], %s165
        %p167 = pneg %p41
        %p168 = pneg %p38
        %p169 = pneg %p62
        %p170 = pneg %p59
        %p171 = pneg %p88
        %p172 = pneg %p85
        %s173 = sand.u32 %s75, 1
        %s174 = scalar_lea.sflag [#allocation4], %s173
        %s175 = sand.u32 %s75, 1
        %s176 = smul.addr %s175, 8
        %s177 = scalar_lea.vmem [#allocation7], %s176
        %v178 = vld [vmem:[%s151] sm:$0xff]
        %v179 = vld [vmem:[#allocation5] sm:$0xff]
        %v180 = vld [vmem:[#allocation5 + $0x8] sm:$0xff]
        %v181 = vld [vmem:[#allocation5 + $0x10] sm:$0xff]
        %v182 = vld [vmem:[#allocation5 + $0x18] sm:$0xff]
        %vm183 = vcmask 261120
        %v185 = vsel %vm183, %v178, 0
        %187 = vmatpush.msra.mxu0 0.0
        %188 = vmatpush.msra.mxu0 0.0
        %189 = vmatpush.msra.mxu0 0.0
        %190 = vmatpush.msra.mxu0 0.0
        %191 = vmatpush.msra.mxu0 0.0
        %192 = vmatpush.msra.mxu0 0.0
        %193 = vmatpush.msra.mxu0 0.0
        %194 = vmatpush.msra.mxu0 0.0
        %195 = vmatpush.msra.mxu0 0.0
        %196 = vmatpush.msra.mxu0 0.0
        %197 = vmatpush.msra.mxu0 0.0
        %198 = vmatpush.msra.mxu0 0.0
        %199 = vmatpush.msra.mxu0 %v182
        %200 = vmatpush.msra.mxu0 %v181
        %201 = vmatpush.msra.mxu0 %v180
        %202 = vmatpush.msra.mxu0 %v179
        %203 = vmatmul.f32.gmra.mxu0 %v185
        %v204 = vpop.f32.mrf.mxu0
        %v205 = vadd.f32 0.0, %v204
        %206 = vdwg.mxu0
        %207 = vst.msk [vmem:[%s177] sm:$0xff] %vm183, %v205
        %s208 = sand.u32 %s75, 1
        %s209 = scalar_lea.sflag [#allocation4], %s208
        %s210 = sand.u32 %s75, 1
        %s211 = smul.addr %s210, 8
        %s212 = scalar_lea.vmem [#allocation7], %s211
        // Predicated region
        $region37: #{tpu_custom_call.1} parent=27 // pred_check
          %p213 = pneg %p85
        $region38: #{tpu_custom_call.1} parent=27 // pred_check_branch
          %215 = sbr.rel (%p213) target = $region40
        $region39: #{tpu_custom_call.1} parent=27 // pred_region
          %217 = vsyncadd %s209, 0
          %s218 = smul.addr %s20, 8
          %s219 = scalar_lea.hbm %s2, %s218
          %s221 = sshll.u32 %s212, 4
          %s222 = int_to_ptr.vmem [resolvable:$true] %s221
          %s223 = sshll.u32 %s219, 4
          %s224 = int_to_ptr.hbm [resolvable:$true] %s223
          %226 = dma.vmem_to_hbm [thread:$0]  %s222, 128, %s224, %s209
        $region40: #{tpu_custom_call.1} parent=27 // pred_fallthru
          _
      $region28: #{tpu_custom_call.1} parent=5 // pred_fallthru
        _
      %p227 = scmp.le.s32.totalorder 2, %s15
      // Predicated region
      $region41: #{tpu_custom_call.1} parent=5 // pred_check
        %p228 = pneg %p227
      $region42: #{tpu_custom_call.1} parent=5 // pred_check_branch
        %230 = sbr.rel (%p228) target = $region44
      $region43: #{tpu_custom_call.1} parent=5 // pred_region
        %s231 = ssub.s32 %s15, 2
        // Predicated region
        $region45: #{tpu_custom_call.1} parent=43 // pred_check
          %p232 = pneg %p91
        $region46: #{tpu_custom_call.1} parent=43 // pred_check_branch
          %234 = sbr.rel (%p232) target = $region48
        $region47: #{tpu_custom_call.1} parent=43 // pred_region
          %s235 = sand.u32 %s76, 1
          %s236 = scalar_lea.sflag [#allocation4], %s235
          %s237 = sand.u32 %s76, 1
          %s238 = smul.addr %s237, 8
          %s239 = scalar_lea.vmem [#allocation7], %s238
          %241 = dma.done %s236, 128
        $region48: #{tpu_custom_call.1} parent=43 // pred_fallthru
          _
      $region44: #{tpu_custom_call.1} parent=5 // pred_fallthru
        _
    $region6: #{tpu_custom_call.1} parent=1 // loop_footer
      %s19 = sadd.s32 1, %s15
    $region7: #{tpu_custom_call.1} parent=1 // loop_footer_branch
      %14 = sbr.rel target = $region3
    $region8: #{tpu_custom_call.1} parent=1 // loop_exit
      _
    %242 = vsyncpa [#allocation3], 1
    %s243 = scalar_lea.sflag [#allocation3], 1
    %244 = vsyncpa %s243, 1
    %245 = vsyncpa [#allocation6], 1
    %246 = vsyncpa [#allocation4], 1
    %s247 = scalar_lea.sflag [#allocation4], 1
    %248 = vsyncpa %s247, 1

</llo_original>
